<compile_context>
chip_gen: v6e
topology: v6e:2x2x1
jax: 0.10.0
libtpu: 0.0.40
codegen_flags: <defaults>
</compile_context>

<pallas_src>
import functools

import jax
import jax.numpy as jnp
from jax.experimental import pallas as pl
from jax.experimental.pallas import tpu as pltpu

VMEM = pltpu.MemorySpace.VMEM
F32 = jnp.float32
BF16 = jnp.bfloat16


def _vspec():
    # Whole array resident in VMEM (shapes here are tiny; single block, no grid).
    return pl.BlockSpec(memory_space=VMEM)


# ------------------------------------------------------------ fused kernel ---

def _fused_forward_kernel(pe_ref, e_ref, a_ref, gsrc_ref, gdst_ref,
                          wpe_ref, bpe_ref,
                          we1_ref, be1_ref, we2_ref, be2_ref,
                          wg_ref, bg_ref,
                          w1_ref, b1_ref, w2_ref, b2_ref,
                          o_ref, *, num_layers):
    f32 = jnp.float32

    # ---- node encoder: x = linear_pe(pe) ------------------------------------
    h = jnp.dot(pe_ref[...], wpe_ref[...], preferred_element_type=f32) + bpe_ref[...]

    # ---- edge MLP: he = linear2_edge(relu(linear1_edge(e))) -----------------
    he = jnp.dot(e_ref[...], we1_ref[...], preferred_element_type=f32) + be1_ref[...]
    he = jnp.maximum(he, 0.0)
    he = jnp.dot(he.astype(BF16), we2_ref[...], preferred_element_type=f32) + be2_ref[...]

    # ---- SAGE layers (mean aggregation over in-neighbors, self loops folded
    #      into A_norm).  Single stacked matmul per layer:
    #      h = relu( concat([h, A_norm @ h]) @ [W_self ; W_neigh] + b ) --------
    for l in range(num_layers):
        hb = h.astype(BF16)
        neigh = jnp.dot(a_ref[...], hb, preferred_element_type=f32)      # [N, H]
        xcat = jnp.concatenate([h, neigh], axis=-1).astype(BF16)         # [N, 2H]
        y = jnp.dot(xcat, wg_ref[l], preferred_element_type=f32) + bg_ref[l]
        h = jnp.maximum(y, 0.0)
    # TODO(synk): dropout inside SAGE_processor omitted (eval-mode identity).

    # ---- ScorePredictor on ORIGINAL edges: gather via one-hot MXU matmuls ---
    hb = h.astype(BF16)
    hu = jnp.dot(gsrc_ref[...], hb, preferred_element_type=f32)          # [E, H]
    hv = jnp.dot(gdst_ref[...], hb, preferred_element_type=f32)          # [E, H]
    z = jnp.concatenate([hu, hv, he], axis=-1).astype(BF16)              # [E, 3H]
    s = jnp.dot(z, w1_ref[...], preferred_element_type=f32) + b1_ref[...]
    s = jnp.maximum(s, 0.0)
    scores = jnp.dot(s.astype(BF16), w2_ref[...], preferred_element_type=f32) + b2_ref[...]
    o_ref[...] = scores.astype(o_ref.dtype)                              # [E, 1]


# --------------------------------------------------------------- parameters --

def _dense_init(key, fin, fout):
    k1, k2 = jax.random.split(key)
    scale = 1.0 / jnp.sqrt(jnp.float32(fin))
    w = jax.random.uniform(k1, (fin, fout), F32, -scale, scale)
    b = jax.random.uniform(k2, (1, fout), F32, -scale, scale)
    return w, b


def init_params(key, node_features, edge_features, hidden_features,
                hidden_edge_features, num_layers, hidden_edge_scores, nb_pos_enc):
    hidden_node_features = hidden_edge_features
    keys = jax.random.split(key, 8 + 2 * num_layers)
    params = {}
    params["linear_pe"] = _dense_init(keys[0], nb_pos_enc + 2, hidden_features)
    # Initialized for shape fidelity but unused in forward (exactly like the reference):
    params["linear1_node"] = _dense_init(keys[1], node_features, hidden_node_features)
    params["linear2_node"] = _dense_init(keys[2], hidden_node_features, hidden_features)
    params["linear1_edge"] = _dense_init(keys[3], edge_features, hidden_edge_features)
    params["linear2_edge"] = _dense_init(keys[4], hidden_edge_features, hidden_features)
    gnn = []
    for l in range(num_layers):
        w_self, b = _dense_init(keys[5 + 2 * l], hidden_features, hidden_features)
        w_neigh, _ = _dense_init(keys[6 + 2 * l], hidden_features, hidden_features)
        gnn.append((w_self, w_neigh, b))
    params["gnn"] = gnn
    params["pred_W1"] = _dense_init(keys[5 + 2 * num_layers], 3 * hidden_features, hidden_edge_scores)
    params["pred_W2"] = _dense_init(keys[6 + 2 * num_layers], hidden_edge_scores, 1)
    return params


# ------------------------------------------------------------------ forward --

def sage_model_forward(params, src, dst, num_nodes, x, e, pe, directed=True):
    del x  # forward() overwrites x with linear_pe(pe), matching the reference.

    N = num_nodes
    E = src.shape[0]
    H = params["linear_pe"][0].shape[1]
    L = len(params["gnn"])

    # --- graph glue (plain JAX, O(E) scatter): dense normalized in-neighbor
    #     adjacency with self loops (dgl.add_self_loop on the directed graph /
    #     add_reverse_edges otherwise).  Cast bf16 for MXU + half DMA bytes. ---
    self_idx = jnp.arange(N)
    if directed:
        s_idx = jnp.concatenate([src, self_idx])
        d_idx = jnp.concatenate([dst, self_idx])
    else:
        s_idx = jnp.concatenate([src, dst, self_idx])
        d_idx = jnp.concatenate([dst, src, self_idx])
    A = jnp.zeros((N, N), F32).at[d_idx, s_idx].add(1.0)
    deg = jnp.maximum(A.sum(axis=1, keepdims=True), 1.0)
    A_norm = (A / deg).astype(BF16)

    # One-hot gather matrices for the predictor (exact in bf16: entries are 0/1).
    g_src = jax.nn.one_hot(src, N, dtype=BF16)                 # [E, N]
    g_dst = jax.nn.one_hot(dst, N, dtype=BF16)                 # [E, N]

    # Stacked per-layer GNN weights: [W_self ; W_neigh] -> (L, 2H, H).
    w_gnn = jnp.stack([jnp.concatenate([ws, wn], axis=0)
                       for (ws, wn, _b) in params["gnn"]]).astype(BF16)
    b_gnn = jnp.stack([b for (_ws, _wn, b) in params["gnn"]])  # (L, 1, H) f32

    wpe, bpe = params["linear_pe"]
    we1, be1 = params["linear1_edge"]
    we2, be2 = params["linear2_edge"]
    w1, b1 = params["pred_W1"]
    w2, b2 = params["pred_W2"]

    kernel = functools.partial(_fused_forward_kernel, num_layers=L)
    scores = pl.pallas_call(
        kernel,
        out_shape=jax.ShapeDtypeStruct((E, 1), F32),
        in_specs=[_vspec()] * 17,
        out_specs=_vspec(),
    )(
        pe.astype(BF16), e.astype(BF16), A_norm, g_src, g_dst,
        wpe.astype(BF16), bpe,
        we1.astype(BF16), be1, we2.astype(BF16), be2,
        w_gnn, b_gnn,
        w1.astype(BF16), b1, w2.astype(BF16), b2,
    )
    return scores                                              # [E, 1]


# --------------------------------------------------------------------- main --

if __name__ == "__main__":
    node_features = 4
    edge_features = 4
    hidden_features = 32
    hidden_edge_features = 16
    num_layers = 2
    hidden_edge_scores = 16
    nb_pos_enc = 6
    N, E = 16, 24

    key = jax.random.PRNGKey(0)
    k_params, k_src, k_dst, k_x, k_e, k_pe = jax.random.split(key, 6)

    params = init_params(k_params, node_features, edge_features, hidden_features,
                         hidden_edge_features, num_layers, hidden_edge_scores,
                         nb_pos_enc)

    src = jax.random.randint(k_src, (E,), 0, N)
    dst = jax.random.randint(k_dst, (E,), 0, N)
    x = jax.random.normal(k_x, (N, node_features), F32)
    e = jax.random.normal(k_e, (E, edge_features), F32)
    pe = jax.random.normal(k_pe, (N, nb_pos_enc + 2), F32)

    scores = sage_model_forward(params, src, dst, N, x, e, pe, directed=True)
    scores = jax.block_until_ready(scores)
    assert scores.shape == (E, 1) and scores.dtype == F32
    assert bool(jnp.all(jnp.isfinite(scores)))
    print("KERNEL_OK")
</pallas_src>

<mosaic_0001>
module attributes {stable_mosaic.version = 11 : i64} {
  func.func @_fused_forward_kernel(%arg0: memref<16x8xbf16, #tpu.memory_space<vmem>>, %arg1: memref<24x4xbf16, #tpu.memory_space<vmem>>, %arg2: memref<16x16xbf16, #tpu.memory_space<vmem>>, %arg3: memref<24x16xbf16, #tpu.memory_space<vmem>>, %arg4: memref<24x16xbf16, #tpu.memory_space<vmem>>, %arg5: memref<8x32xbf16, #tpu.memory_space<vmem>>, %arg6: memref<1x32xf32, #tpu.memory_space<vmem>>, %arg7: memref<4x16xbf16, #tpu.memory_space<vmem>>, %arg8: memref<1x16xf32, #tpu.memory_space<vmem>>, %arg9: memref<16x32xbf16, #tpu.memory_space<vmem>>, %arg10: memref<1x32xf32, #tpu.memory_space<vmem>>, %arg11: memref<2x64x32xbf16, #tpu.memory_space<vmem>>, %arg12: memref<2x1x32xf32, #tpu.memory_space<vmem>>, %arg13: memref<96x16xbf16, #tpu.memory_space<vmem>>, %arg14: memref<1x16xf32, #tpu.memory_space<vmem>>, %arg15: memref<16x1xbf16, #tpu.memory_space<vmem>>, %arg16: memref<1x1xf32, #tpu.memory_space<vmem>>, %arg17: memref<24x1xf32, #tpu.memory_space<vmem>>) attributes {dimension_semantics = [], scalar_prefetch = 0 : i64, scratch_operands = 0 : i64, tpu.core_type = #tpu.core_type<tc>} {
    %c0 = arith.constant 0 : index
    %c0_0 = arith.constant 0 : index
    %0 = vector.load %arg0[%c0, %c0_0] : memref<16x8xbf16, #tpu.memory_space<vmem>>, vector<16x8xbf16>
    %c0_1 = arith.constant 0 : index
    %c0_2 = arith.constant 0 : index
    %1 = vector.load %arg5[%c0_1, %c0_2] : memref<8x32xbf16, #tpu.memory_space<vmem>>, vector<8x32xbf16>
    %cst = arith.constant dense<0.000000e+00> : vector<16x32xf32>
    %2 = tpu.matmul %0, %1, %cst {dimension_numbers = #tpu.dot_dimension_numbers<[1], [0], [0], [1], [0, 0, 1, 1], [], []>} : vector<16x8xbf16>, vector<8x32xbf16>, vector<16x32xf32> -> vector<16x32xf32>
    %c0_3 = arith.constant 0 : index
    %c0_4 = arith.constant 0 : index
    %3 = vector.load %arg6[%c0_3, %c0_4] : memref<1x32xf32, #tpu.memory_space<vmem>>, vector<1x32xf32>
    %4 = vector.broadcast %3 : vector<1x32xf32> to vector<16x32xf32>
    %5 = arith.addf %2, %4 : vector<16x32xf32>
    %c0_5 = arith.constant 0 : index
    %c0_6 = arith.constant 0 : index
    %6 = vector.load %arg1[%c0_5, %c0_6] : memref<24x4xbf16, #tpu.memory_space<vmem>>, vector<24x4xbf16>
    %c0_7 = arith.constant 0 : index
    %c0_8 = arith.constant 0 : index
    %7 = vector.load %arg7[%c0_7, %c0_8] : memref<4x16xbf16, #tpu.memory_space<vmem>>, vector<4x16xbf16>
    %cst_9 = arith.constant dense<0.000000e+00> : vector<24x16xf32>
    %8 = tpu.matmul %6, %7, %cst_9 {dimension_numbers = #tpu.dot_dimension_numbers<[1], [0], [0], [1], [0, 0, 1, 1], [], []>} : vector<24x4xbf16>, vector<4x16xbf16>, vector<24x16xf32> -> vector<24x16xf32>
    %c0_10 = arith.constant 0 : index
    %c0_11 = arith.constant 0 : index
    %9 = vector.load %arg8[%c0_10, %c0_11] : memref<1x16xf32, #tpu.memory_space<vmem>>, vector<1x16xf32>
    %10 = vector.broadcast %9 : vector<1x16xf32> to vector<24x16xf32>
    %11 = arith.addf %8, %10 : vector<24x16xf32>
    %cst_12 = arith.constant 0.000000e+00 : f32
    %12 = vector.broadcast %cst_12 : f32 to vector<24x16xf32>
    %13 = arith.maximumf %11, %12 : vector<24x16xf32>
    %14 = arith.truncf %13 : vector<24x16xf32> to vector<24x16xbf16>
    %c0_13 = arith.constant 0 : index
    %c0_14 = arith.constant 0 : index
    %15 = vector.load %arg9[%c0_13, %c0_14] : memref<16x32xbf16, #tpu.memory_space<vmem>>, vector<16x32xbf16>
    %cst_15 = arith.constant dense<0.000000e+00> : vector<24x32xf32>
    %16 = tpu.matmul %14, %15, %cst_15 {dimension_numbers = #tpu.dot_dimension_numbers<[1], [0], [0], [1], [0, 0, 1, 1], [], []>} : vector<24x16xbf16>, vector<16x32xbf16>, vector<24x32xf32> -> vector<24x32xf32>
    %c0_16 = arith.constant 0 : index
    %c0_17 = arith.constant 0 : index
    %17 = vector.load %arg10[%c0_16, %c0_17] : memref<1x32xf32, #tpu.memory_space<vmem>>, vector<1x32xf32>
    %18 = vector.broadcast %17 : vector<1x32xf32> to vector<24x32xf32>
    %19 = arith.addf %16, %18 : vector<24x32xf32>
    %20 = arith.truncf %5 : vector<16x32xf32> to vector<16x32xbf16>
    %c0_18 = arith.constant 0 : index
    %c0_19 = arith.constant 0 : index
    %21 = vector.load %arg2[%c0_18, %c0_19] : memref<16x16xbf16, #tpu.memory_space<vmem>>, vector<16x16xbf16>
    %cst_20 = arith.constant dense<0.000000e+00> : vector<16x32xf32>
    %22 = tpu.matmul %21, %20, %cst_20 {dimension_numbers = #tpu.dot_dimension_numbers<[1], [0], [0], [1], [0, 0, 1, 1], [], []>} : vector<16x16xbf16>, vector<16x32xbf16>, vector<16x32xf32> -> vector<16x32xf32>
    %23 = tpu.concatenate %5, %22 in 1 : vector<16x32xf32>, vector<16x32xf32> -> vector<16x64xf32>
    %24 = arith.truncf %23 : vector<16x64xf32> to vector<16x64xbf16>
    %c0_21 = arith.constant 0 : index
    %c0_22 = arith.constant 0 : index
    %c0_23 = arith.constant 0 : index
    %25 = vector.load %arg11[%c0_21, %c0_22, %c0_23] : memref<2x64x32xbf16, #tpu.memory_space<vmem>>, vector<1x64x32xbf16>
    %26 = vector.shape_cast %25 : vector<1x64x32xbf16> to vector<64x32xbf16>
    %cst_24 = arith.constant dense<0.000000e+00> : vector<16x32xf32>
    %27 = tpu.matmul %24, %26, %cst_24 {dimension_numbers = #tpu.dot_dimension_numbers<[1], [0], [0], [1], [0, 0, 1, 1], [], []>} : vector<16x64xbf16>, vector<64x32xbf16>, vector<16x32xf32> -> vector<16x32xf32>
    %c0_25 = arith.constant 0 : index
    %c0_26 = arith.constant 0 : index
    %c0_27 = arith.constant 0 : index
    %28 = vector.load %arg12[%c0_25, %c0_26, %c0_27] : memref<2x1x32xf32, #tpu.memory_space<vmem>>, vector<1x1x32xf32>
    %29 = vector.shape_cast %28 : vector<1x1x32xf32> to vector<1x32xf32>
    %30 = vector.broadcast %29 : vector<1x32xf32> to vector<16x32xf32>
    %31 = arith.addf %27, %30 : vector<16x32xf32>
    %cst_28 = arith.constant 0.000000e+00 : f32
    %32 = vector.broadcast %cst_28 : f32 to vector<16x32xf32>
    %33 = arith.maximumf %31, %32 : vector<16x32xf32>
    %34 = arith.truncf %33 : vector<16x32xf32> to vector<16x32xbf16>
    %c0_29 = arith.constant 0 : index
    %c0_30 = arith.constant 0 : index
    %35 = vector.load %arg2[%c0_29, %c0_30] : memref<16x16xbf16, #tpu.memory_space<vmem>>, vector<16x16xbf16>
    %cst_31 = arith.constant dense<0.000000e+00> : vector<16x32xf32>
    %36 = tpu.matmul %35, %34, %cst_31 {dimension_numbers = #tpu.dot_dimension_numbers<[1], [0], [0], [1], [0, 0, 1, 1], [], []>} : vector<16x16xbf16>, vector<16x32xbf16>, vector<16x32xf32> -> vector<16x32xf32>
    %37 = tpu.concatenate %33, %36 in 1 : vector<16x32xf32>, vector<16x32xf32> -> vector<16x64xf32>
    %38 = arith.truncf %37 : vector<16x64xf32> to vector<16x64xbf16>
    %c1 = arith.constant 1 : index
    %c0_32 = arith.constant 0 : index
    %c0_33 = arith.constant 0 : index
    %39 = vector.load %arg11[%c1, %c0_32, %c0_33] : memref<2x64x32xbf16, #tpu.memory_space<vmem>>, vector<1x64x32xbf16>
    %40 = vector.shape_cast %39 : vector<1x64x32xbf16> to vector<64x32xbf16>
    %cst_34 = arith.constant dense<0.000000e+00> : vector<16x32xf32>
    %41 = tpu.matmul %38, %40, %cst_34 {dimension_numbers = #tpu.dot_dimension_numbers<[1], [0], [0], [1], [0, 0, 1, 1], [], []>} : vector<16x64xbf16>, vector<64x32xbf16>, vector<16x32xf32> -> vector<16x32xf32>
    %c1_35 = arith.constant 1 : index
    %c0_36 = arith.constant 0 : index
    %c0_37 = arith.constant 0 : index
    %42 = vector.load %arg12[%c1_35, %c0_36, %c0_37] : memref<2x1x32xf32, #tpu.memory_space<vmem>>, vector<1x1x32xf32>
    %43 = vector.shape_cast %42 : vector<1x1x32xf32> to vector<1x32xf32>
    %44 = vector.broadcast %43 : vector<1x32xf32> to vector<16x32xf32>
    %45 = arith.addf %41, %44 : vector<16x32xf32>
    %cst_38 = arith.constant 0.000000e+00 : f32
    %46 = vector.broadcast %cst_38 : f32 to vector<16x32xf32>
    %47 = arith.maximumf %45, %46 : vector<16x32xf32>
    %48 = arith.truncf %47 : vector<16x32xf32> to vector<16x32xbf16>
    %c0_39 = arith.constant 0 : index
    %c0_40 = arith.constant 0 : index
    %49 = vector.load %arg3[%c0_39, %c0_40] : memref<24x16xbf16, #tpu.memory_space<vmem>>, vector<24x16xbf16>
    %cst_41 = arith.constant dense<0.000000e+00> : vector<24x32xf32>
    %50 = tpu.matmul %49, %48, %cst_41 {dimension_numbers = #tpu.dot_dimension_numbers<[1], [0], [0], [1], [0, 0, 1, 1], [], []>} : vector<24x16xbf16>, vector<16x32xbf16>, vector<24x32xf32> -> vector<24x32xf32>
    %c0_42 = arith.constant 0 : index
    %c0_43 = arith.constant 0 : index
    %51 = vector.load %arg4[%c0_42, %c0_43] : memref<24x16xbf16, #tpu.memory_space<vmem>>, vector<24x16xbf16>
    %cst_44 = arith.constant dense<0.000000e+00> : vector<24x32xf32>
    %52 = tpu.matmul %51, %48, %cst_44 {dimension_numbers = #tpu.dot_dimension_numbers<[1], [0], [0], [1], [0, 0, 1, 1], [], []>} : vector<24x16xbf16>, vector<16x32xbf16>, vector<24x32xf32> -> vector<24x32xf32>
    %53 = tpu.concatenate %50, %52, %19 in 1 : vector<24x32xf32>, vector<24x32xf32>, vector<24x32xf32> -> vector<24x96xf32>
    %54 = arith.truncf %53 : vector<24x96xf32> to vector<24x96xbf16>
    %c0_45 = arith.constant 0 : index
    %c0_46 = arith.constant 0 : index
    %55 = vector.load %arg13[%c0_45, %c0_46] : memref<96x16xbf16, #tpu.memory_space<vmem>>, vector<96x16xbf16>
    %cst_47 = arith.constant dense<0.000000e+00> : vector<24x16xf32>
    %56 = tpu.matmul %54, %55, %cst_47 {dimension_numbers = #tpu.dot_dimension_numbers<[1], [0], [0], [1], [0, 0, 1, 1], [], []>} : vector<24x96xbf16>, vector<96x16xbf16>, vector<24x16xf32> -> vector<24x16xf32>
    %c0_48 = arith.constant 0 : index
    %c0_49 = arith.constant 0 : index
    %57 = vector.load %arg14[%c0_48, %c0_49] : memref<1x16xf32, #tpu.memory_space<vmem>>, vector<1x16xf32>
    %58 = vector.broadcast %57 : vector<1x16xf32> to vector<24x16xf32>
    %59 = arith.addf %56, %58 : vector<24x16xf32>
    %cst_50 = arith.constant 0.000000e+00 : f32
    %60 = vector.broadcast %cst_50 : f32 to vector<24x16xf32>
    %61 = arith.maximumf %59, %60 : vector<24x16xf32>
    %62 = arith.truncf %61 : vector<24x16xf32> to vector<24x16xbf16>
    %c0_51 = arith.constant 0 : index
    %c0_52 = arith.constant 0 : index
    %63 = vector.load %arg15[%c0_51, %c0_52] : memref<16x1xbf16, #tpu.memory_space<vmem>>, vector<16x1xbf16>
    %cst_53 = arith.constant dense<0.000000e+00> : vector<24x1xf32>
    %64 = tpu.matmul %62, %63, %cst_53 {dimension_numbers = #tpu.dot_dimension_numbers<[1], [0], [0], [1], [0, 0, 1, 1], [], []>} : vector<24x16xbf16>, vector<16x1xbf16>, vector<24x1xf32> -> vector<24x1xf32>
    %c0_54 = arith.constant 0 : index
    %c0_55 = arith.constant 0 : index
    %65 = vector.load %arg16[%c0_54, %c0_55] : memref<1x1xf32, #tpu.memory_space<vmem>>, vector<1x1xf32>
    %66 = vector.broadcast %65 : vector<1x1xf32> to vector<24x1xf32>
    %67 = arith.addf %64, %66 : vector<24x1xf32>
    %c0_56 = arith.constant 0 : index
    %c0_57 = arith.constant 0 : index
    %68 = vector.load %arg17[%c0_56, %c0_57] : memref<24x1xf32, #tpu.memory_space<vmem>>, vector<24x1xf32>
    tpu.vector_store %arg17[%c0_56, %c0_57], %67 {strides = array<i32>} : memref<24x1xf32, #tpu.memory_space<vmem>>, vector<24x1xf32>,
    return
  }
}

</mosaic_0001>

<llo_original>
// kernel: tpu_custom_call.1
$region0: #{tpu_custom_call.1}
  #allocation0 [shape = 'u32[]', space=smem, size = 0x4, offset = 0x4, fixed_abs, tag = 'smem constant byte address 0x4 - core index']
  #allocation1 [shape = 'u32[144,128]{1,0:T(1,128)}', space=vmem, size = 0x12000, scoped, tag = 'internal scratch']
  #allocation2 [shape = 'f32[1,1]{1,0:T(1,128)S(1)}', space=vmem, size = 0x200, scoped, tag = 'scoped memory for tpu_custom_call.1']
  %s0 = inlined_call_operand.vmem [shape: bf16[16,8], index: 0, kind: input, shape index: {}]
  %s1 = inlined_call_operand.vmem [shape: bf16[24,4], index: 1, kind: input, shape index: {}]
  %s2 = inlined_call_operand.vmem [shape: bf16[16,16], index: 2, kind: input, shape index: {}]
  %s3 = inlined_call_operand.vmem [shape: bf16[24,16], index: 3, kind: input, shape index: {}]
  %s4 = inlined_call_operand.vmem [shape: bf16[24,16], index: 4, kind: input, shape index: {}]
  %s5 = inlined_call_operand.vmem [shape: bf16[8,32], index: 5, kind: input, shape index: {}]
  %s6 = inlined_call_operand.vmem [shape: f32[1,32], index: 6, kind: input, shape index: {}]
  %s7 = inlined_call_operand.vmem [shape: bf16[4,16], index: 7, kind: input, shape index: {}]
  %s8 = inlined_call_operand.vmem [shape: f32[1,16], index: 8, kind: input, shape index: {}]
  %s9 = inlined_call_operand.vmem [shape: bf16[16,32], index: 9, kind: input, shape index: {}]
  %s10 = inlined_call_operand.vmem [shape: f32[1,32], index: 10, kind: input, shape index: {}]
  %s11 = inlined_call_operand.vmem [shape: bf16[2,64,32], index: 11, kind: input, shape index: {}]
  %s12 = inlined_call_operand.vmem [shape: f32[2,1,32], index: 12, kind: input, shape index: {}]
  %s13 = inlined_call_operand.vmem [shape: bf16[96,16], index: 13, kind: input, shape index: {}]
  %s14 = inlined_call_operand.vmem [shape: f32[1,16], index: 14, kind: input, shape index: {}]
  %s15 = inlined_call_operand.vmem [shape: bf16[16,1], index: 15, kind: input, shape index: {}]
  %s16 = inlined_call_operand.<no memory space> [shape: f32[1,1], index: 16, kind: input, shape index: {}]
  %s17 = inlined_call_operand.vmem [shape: f32[24,1], index: 17, kind: output, shape index: {}]
  %s18 = sld [smem:[#allocation0]]
  $region78: #{tpu_custom_call.1} parent=0
    _
  %s20 = ssub.s32 1, %s18
  %s21 = scalar_select 0, %s20, %s18
  %v22 = vstv %s16
  %23 = vst [vmem:[#allocation2] sm:$0x1] %v22
  // Predicated region
  $region2: #{tpu_custom_call.1} parent=0 // pred_check
    _
  $region3: #{tpu_custom_call.1} parent=0 // pred_check_branch
    %25 = sbr.rel (0) target = $region5
  $region4: #{tpu_custom_call.1} parent=0 // pred_region
    _
  $region5: #{tpu_custom_call.1} parent=0 // pred_fallthru
    _
  // Predicated region
  $region6: #{tpu_custom_call.1} parent=0 // pred_check
    _
  $region7: #{tpu_custom_call.1} parent=0 // pred_check_branch
    %27 = sbr.rel (0) target = $region9
  $region8: #{tpu_custom_call.1} parent=0 // pred_region
    _
  $region9: #{tpu_custom_call.1} parent=0 // pred_fallthru
    _
  // Predicated region
  $region10: #{tpu_custom_call.1} parent=0 // pred_check
    _
  $region11: #{tpu_custom_call.1} parent=0 // pred_check_branch
    %29 = sbr.rel (0) target = $region13
  $region12: #{tpu_custom_call.1} parent=0 // pred_region
    _
  $region13: #{tpu_custom_call.1} parent=0 // pred_fallthru
    _
  // Predicated region
  $region14: #{tpu_custom_call.1} parent=0 // pred_check
    _
  $region15: #{tpu_custom_call.1} parent=0 // pred_check_branch
    %31 = sbr.rel (0) target = $region17
  $region16: #{tpu_custom_call.1} parent=0 // pred_region
    _
  $region17: #{tpu_custom_call.1} parent=0 // pred_fallthru
    _
  // Predicated region
  $region18: #{tpu_custom_call.1} parent=0 // pred_check
    _
  $region19: #{tpu_custom_call.1} parent=0 // pred_check_branch
    %33 = sbr.rel (0) target = $region21
  $region20: #{tpu_custom_call.1} parent=0 // pred_region
    _
  $region21: #{tpu_custom_call.1} parent=0 // pred_fallthru
    _
  // Predicated region
  $region22: #{tpu_custom_call.1} parent=0 // pred_check
    _
  $region23: #{tpu_custom_call.1} parent=0 // pred_check_branch
    %35 = sbr.rel (0) target = $region25
  $region24: #{tpu_custom_call.1} parent=0 // pred_region
    _
  $region25: #{tpu_custom_call.1} parent=0 // pred_fallthru
    _
  // Predicated region
  $region26: #{tpu_custom_call.1} parent=0 // pred_check
    _
  $region27: #{tpu_custom_call.1} parent=0 // pred_check_branch
    %37 = sbr.rel (0) target = $region29
  $region28: #{tpu_custom_call.1} parent=0 // pred_region
    _
  $region29: #{tpu_custom_call.1} parent=0 // pred_fallthru
    _
  // Predicated region
  $region30: #{tpu_custom_call.1} parent=0 // pred_check
    _
  $region31: #{tpu_custom_call.1} parent=0 // pred_check_branch
    %39 = sbr.rel (0) target = $region33
  $region32: #{tpu_custom_call.1} parent=0 // pred_region
    _
  $region33: #{tpu_custom_call.1} parent=0 // pred_fallthru
    _
  // Predicated region
  $region34: #{tpu_custom_call.1} parent=0 // pred_check
    _
  $region35: #{tpu_custom_call.1} parent=0 // pred_check_branch
    %41 = sbr.rel (0) target = $region37
  $region36: #{tpu_custom_call.1} parent=0 // pred_region
    _
  $region37: #{tpu_custom_call.1} parent=0 // pred_fallthru
    _
  // Predicated region
  $region38: #{tpu_custom_call.1} parent=0 // pred_check
    _
  $region39: #{tpu_custom_call.1} parent=0 // pred_check_branch
    %43 = sbr.rel (0) target = $region41
  $region40: #{tpu_custom_call.1} parent=0 // pred_region
    _
  $region41: #{tpu_custom_call.1} parent=0 // pred_fallthru
    _
  // Predicated region
  $region42: #{tpu_custom_call.1} parent=0 // pred_check
    _
  $region43: #{tpu_custom_call.1} parent=0 // pred_check_branch
    %45 = sbr.rel (0) target = $region45
  $region44: #{tpu_custom_call.1} parent=0 // pred_region
    _
  $region45: #{tpu_custom_call.1} parent=0 // pred_fallthru
    _
  // Predicated region
  $region46: #{tpu_custom_call.1} parent=0 // pred_check
    _
  $region47: #{tpu_custom_call.1} parent=0 // pred_check_branch
    %47 = sbr.rel (0) target = $region49
  $region48: #{tpu_custom_call.1} parent=0 // pred_region
    _
  $region49: #{tpu_custom_call.1} parent=0 // pred_fallthru
    _
  // Predicated region
  $region50: #{tpu_custom_call.1} parent=0 // pred_check
    _
  $region51: #{tpu_custom_call.1} parent=0 // pred_check_branch
    %49 = sbr.rel (0) target = $region53
  $region52: #{tpu_custom_call.1} parent=0 // pred_region
    _
  $region53: #{tpu_custom_call.1} parent=0 // pred_fallthru
    _
  // Predicated region
  $region54: #{tpu_custom_call.1} parent=0 // pred_check
    _
  $region55: #{tpu_custom_call.1} parent=0 // pred_check_branch
    %51 = sbr.rel (0) target = $region57
  $region56: #{tpu_custom_call.1} parent=0 // pred_region
    _
  $region57: #{tpu_custom_call.1} parent=0 // pred_fallthru
    _
  // Predicated region
  $region58: #{tpu_custom_call.1} parent=0 // pred_check
    _
  $region59: #{tpu_custom_call.1} parent=0 // pred_check_branch
    %53 = sbr.rel (0) target = $region61
  $region60: #{tpu_custom_call.1} parent=0 // pred_region
    _
  $region61: #{tpu_custom_call.1} parent=0 // pred_fallthru
    _
  // Predicated region
  $region62: #{tpu_custom_call.1} parent=0 // pred_check
    _
  $region63: #{tpu_custom_call.1} parent=0 // pred_check_branch
    %55 = sbr.rel (0) target = $region65
  $region64: #{tpu_custom_call.1} parent=0 // pred_region
    _
  $region65: #{tpu_custom_call.1} parent=0 // pred_fallthru
    _
  // Predicated region
  $region66: #{tpu_custom_call.1} parent=0 // pred_check
    _
  $region67: #{tpu_custom_call.1} parent=0 // pred_check_branch
    %57 = sbr.rel (0) target = $region69
  $region68: #{tpu_custom_call.1} parent=0 // pred_region
    _
  $region69: #{tpu_custom_call.1} parent=0 // pred_fallthru
    _
  %v59 = vld [vmem:[%s0] sm:$0xf]
  %v60 = vld [vmem:[%s0 + $0x4] sm:$0xf]
  %v61 = vld [vmem:[%s5] sm:$0xf]
  %v62 = vld [vmem:[%s6] sm:$0x1]
  %v64 = vlaneseq
  %v65 = vshrl.u32 %v64, 7
  %v66 = vsub.s32 0, %v65
  %v67 = vrot.slane %v62, %v66
  %v71 = vunpack.c.l.b16 %v59
  %v72 = vunpack.c.l.b16 %v60
  %v73 = vpack.c.b16 %v72, %v71
  %vm74 = vcmask 64512
  %v76 = vsel %vm74, %v73, 0
  %vm78 = vcmask 1043456
  %v80 = vsel %vm78, %v61, 0
  %82 = vmatprep.subr.bf16.mxu0 0
  %83 = vmatpush1.bf16.msra.mxu0 0
  %84 = vmatprep.subr.bf16.mxu0 0
  %85 = vmatpush1.bf16.msra.mxu0 0
  %86 = vmatprep.subr.bf16.mxu0 0
  %87 = vmatpush1.bf16.msra.mxu0 0
  %88 = vmatprep.subr.bf16.mxu0 0
  %89 = vmatpush1.bf16.msra.mxu0 0
  %90 = vmatprep.subr.bf16.mxu0 0
  %91 = vmatpush1.bf16.msra.mxu0 0
  %92 = vmatprep.subr.bf16.mxu0 0
  %93 = vmatpush1.bf16.msra.mxu0 0
  %94 = vmatprep.subr.bf16.mxu0 0
  %95 = vmatpush1.bf16.msra.mxu0 0
  %96 = vmatprep.subr.bf16.mxu0 0
  %97 = vmatpush1.bf16.msra.mxu0 %v80
  %98 = vmatprep.subr.bf16.mxu0 0
  %99 = vmatpush2.bf16.msra.mxu0 0
  %100 = vmatprep.subr.bf16.mxu0 0
  %101 = vmatpush2.bf16.msra.mxu0 0
  %102 = vmatprep.subr.bf16.mxu0 0
  %103 = vmatpush2.bf16.msra.mxu0 0
  %104 = vmatprep.subr.bf16.mxu0 0
  %105 = vmatpush2.bf16.msra.mxu0 0
  %106 = vmatprep.subr.bf16.mxu0 0
  %107 = vmatpush2.bf16.msra.mxu0 0
  %108 = vmatprep.subr.bf16.mxu0 0
  %109 = vmatpush2.bf16.msra.mxu0 0
  %110 = vmatprep.subr.bf16.mxu0 0
  %111 = vmatpush2.bf16.msra.mxu0 0
  %112 = vmatprep.subr.bf16.mxu0 0
  %113 = vmatpush2.bf16.msra.mxu0 0
  %114 = vmatprep.mubr.bf16.mxu0 0
  %115 = vmatmul.mubr.bf16.gmra.mxu0 %v76
  %v116 = vpop.f32.mrf.mxu0
  %v117 = vadd.f32 %v67, %v116
  %v118 = vpop.f32.mrf.mxu0
  %v119 = vpop.f32.mrf.mxu0
  %v120 = vadd.f32 %v67, %v119
  %v121 = vpop.f32.mrf.mxu0
  %122 = vdwg.mxu0
  %v123 = vld [vmem:[%s1] sm:$0xf]
  %v124 = vld [vmem:[%s1 + $0x4] sm:$0xf]
  %v125 = vld [vmem:[%s1 + $0x8] sm:$0xf]
  %v126 = vld [vmem:[%s7] sm:$0x3]
  %v127 = vld [vmem:[%s8] sm:$0x1]
  %v129 = vlaneseq
  %v130 = vshrl.u32 %v129, 7
  %v131 = vsub.s32 0, %v130
  %v132 = vrot.slane %v127, %v131
  %v137 = vunpack.c.l.b16 %v123
  %v138 = vunpack.c.l.b16 %v124
  %v139 = vunpack.c.l.b16 %v125
  %v140 = vpack.c.b16 %v138, %v137
  %v141 = vpack.c.b16 %v139, %v139
  %vm142 = vcmask 31744
  %v144 = vsel %vm142, %v140, 0
  %v147 = vsel %vm142, %v141, 0
  %vm149 = vcmask 1041408
  %v151 = vsel %vm149, %v126, 0
  %153 = vmatprep.subr.bf16.mxu0 0
  %154 = vmatpush1.bf16.msra.mxu0 0
  %155 = vmatprep.subr.bf16.mxu0 0
  %156 = vmatpush1.bf16.msra.mxu0 0
  %157 = vmatprep.subr.bf16.mxu0 0
  %158 = vmatpush1.bf16.msra.mxu0 0
  %159 = vmatprep.subr.bf16.mxu0 0
  %160 = vmatpush1.bf16.msra.mxu0 0
  %161 = vmatprep.subr.bf16.mxu0 0
  %162 = vmatpush1.bf16.msra.mxu0 0
  %163 = vmatprep.subr.bf16.mxu0 0
  %164 = vmatpush1.bf16.msra.mxu0 0
  %165 = vmatprep.subr.bf16.mxu0 0
  %166 = vmatpush1.bf16.msra.mxu0 0
  %167 = vmatprep.subr.bf16.mxu0 0
  %168 = vmatpush1.bf16.msra.mxu0 %v151
  %169 = vmatprep.subr.bf16.mxu0 0
  %170 = vmatpush2.bf16.msra.mxu0 0
  %171 = vmatprep.subr.bf16.mxu0 0
  %172 = vmatpush2.bf16.msra.mxu0 0
  %173 = vmatprep.subr.bf16.mxu0 0
  %174 = vmatpush2.bf16.msra.mxu0 0
  %175 = vmatprep.subr.bf16.mxu0 0
  %176 = vmatpush2.bf16.msra.mxu0 0
  %177 = vmatprep.subr.bf16.mxu0 0
  %178 = vmatpush2.bf16.msra.mxu0 0
  %179 = vmatprep.subr.bf16.mxu0 0
  %180 = vmatpush2.bf16.msra.mxu0 0
  %181 = vmatprep.subr.bf16.mxu0 0
  %182 = vmatpush2.bf16.msra.mxu0 0
  %183 = vmatprep.subr.bf16.mxu0 0
  %184 = vmatpush2.bf16.msra.mxu0 0
  %185 = vmatprep.mubr.bf16.mxu0 0
  %186 = vmatmul.mubr.bf16.gmra.mxu0 %v144
  %v187 = vpop.f32.mrf.mxu0
  %v188 = vadd.f32 %v132, %v187
  %v189 = vpop.f32.mrf.mxu0
  %v190 = vpop.f32.mrf.mxu0
  %v191 = vadd.f32 %v132, %v190
  %v192 = vpop.f32.mrf.mxu0
  %193 = vmatprep.mubr.bf16.mxu0 0
  %194 = vmatmul.mubr.bf16.gmra.mxu0 %v147
  %v195 = vpop.f32.mrf.mxu0
  %v196 = vadd.f32 %v132, %v195
  %v197 = vpop.f32.mrf.mxu0
  %v198 = vpop.f32.mrf.mxu0
  %v199 = vpop.f32.mrf.mxu0
  %200 = vdwg.mxu0
  %v201 = vmax.f32 %v188, 0.0
  %v202 = vmax.f32 %v191, 0.0
  %v203 = vmax.f32 %v196, 0.0
  %v204 = vpack.c.bf16 %v202, %v201
  %v205 = vpack.c.bf16 %v203, %v203
  %v206 = vld [vmem:[%s9] sm:$0xf]
  %v207 = vld [vmem:[%s9 + $0x4] sm:$0xf]
  %v208 = vld [vmem:[%s10] sm:$0x1]
  %v210 = vlaneseq
  %v211 = vshrl.u32 %v210, 7
  %v212 = vsub.s32 0, %v211
  %v213 = vrot.slane %v208, %v212
  %v217 = vunpack.c.l.b16 %v206
  %v218 = vunpack.c.l.b16 %v207
  %v219 = vpack.c.b16 %v218, %v217
  %vm221 = vcmask 130048
  %v223 = vsel %vm221, %v204, 0
  %v226 = vsel %vm221, %v205, 0
  %228 = vmatprep.subr.bf16.mxu0 0
  %229 = vmatpush1.bf16.msra.mxu0 0
  %230 = vmatprep.subr.bf16.mxu0 0
  %231 = vmatpush1.bf16.msra.mxu0 0
  %232 = vmatprep.subr.bf16.mxu0 0
  %233 = vmatpush1.bf16.msra.mxu0 0
  %234 = vmatprep.subr.bf16.mxu0 0
  %235 = vmatpush1.bf16.msra.mxu0 0
  %236 = vmatprep.subr.bf16.mxu0 0
  %237 = vmatpush1.bf16.msra.mxu0 0
  %238 = vmatprep.subr.bf16.mxu0 0
  %239 = vmatpush1.bf16.msra.mxu0 0
  %240 = vmatprep.subr.bf16.mxu0 0
  %241 = vmatpush1.bf16.msra.mxu0 0
  %242 = vmatprep.subr.bf16.mxu0 0
  %243 = vmatpush1.bf16.msra.mxu0 %v219
  %244 = vmatprep.subr.bf16.mxu0 0
  %245 = vmatpush2.bf16.msra.mxu0 0
  %246 = vmatprep.subr.bf16.mxu0 0
  %247 = vmatpush2.bf16.msra.mxu0 0
  %248 = vmatprep.subr.bf16.mxu0 0
  %249 = vmatpush2.bf16.msra.mxu0 0
  %250 = vmatprep.subr.bf16.mxu0 0
  %251 = vmatpush2.bf16.msra.mxu0 0
  %252 = vmatprep.subr.bf16.mxu0 0
  %253 = vmatpush2.bf16.msra.mxu0 0
  %254 = vmatprep.subr.bf16.mxu0 0
  %255 = vmatpush2.bf16.msra.mxu0 0
  %256 = vmatprep.subr.bf16.mxu0 0
  %257 = vmatpush2.bf16.msra.mxu0 0
  %258 = vmatprep.subr.bf16.mxu0 0
  %259 = vmatpush2.bf16.msra.mxu0 0
  %260 = vmatprep.mubr.bf16.mxu0 0
  %261 = vmatmul.mubr.bf16.gmra.mxu0 %v223
  %v262 = vpop.f32.mrf.mxu0
  %v263 = vadd.f32 %v213, %v262
  %v264 = vpop.f32.mrf.mxu0
  %v265 = vpop.f32.mrf.mxu0
  %v266 = vadd.f32 %v213, %v265
  %v267 = vpop.f32.mrf.mxu0
  %268 = vmatprep.mubr.bf16.mxu0 0
  %269 = vmatmul.mubr.bf16.gmra.mxu0 %v226
  %v270 = vpop.f32.mrf.mxu0
  %v271 = vadd.f32 %v213, %v270
  %v272 = vpop.f32.mrf.mxu0
  %v273 = vpop.f32.mrf.mxu0
  %v274 = vpop.f32.mrf.mxu0
  %275 = vdwg.mxu0
  %v276 = vpack.c.bf16 %v120, %v117
  %v277 = vld [vmem:[%s2] sm:$0xf]
  %v278 = vld [vmem:[%s2 + $0x4] sm:$0xf]
  %v281 = vunpack.c.l.b16 %v277
  %v282 = vunpack.c.l.b16 %v278
  %v283 = vpack.c.b16 %v282, %v281
  %v285 = vsel %vm221, %v283, 0
  %287 = vmatprep.subr.bf16.mxu0 0
  %288 = vmatpush1.bf16.msra.mxu0 0
  %289 = vmatprep.subr.bf16.mxu0 0
  %290 = vmatpush1.bf16.msra.mxu0 0
  %291 = vmatprep.subr.bf16.mxu0 0
  %292 = vmatpush1.bf16.msra.mxu0 0
  %293 = vmatprep.subr.bf16.mxu0 0
  %294 = vmatpush1.bf16.msra.mxu0 0
  %295 = vmatprep.subr.bf16.mxu0 0
  %296 = vmatpush1.bf16.msra.mxu0 0
  %297 = vmatprep.subr.bf16.mxu0 0
  %298 = vmatpush1.bf16.msra.mxu0 0
  %299 = vmatprep.subr.bf16.mxu0 0
  %300 = vmatpush1.bf16.msra.mxu0 0
  %301 = vmatprep.subr.bf16.mxu0 0
  %302 = vmatpush1.bf16.msra.mxu0 %v276
  %303 = vmatprep.subr.bf16.mxu0 0
  %304 = vmatpush2.bf16.msra.mxu0 0
  %305 = vmatprep.subr.bf16.mxu0 0
  %306 = vmatpush2.bf16.msra.mxu0 0
  %307 = vmatprep.subr.bf16.mxu0 0
  %308 = vmatpush2.bf16.msra.mxu0 0
  %309 = vmatprep.subr.bf16.mxu0 0
  %310 = vmatpush2.bf16.msra.mxu0 0
  %311 = vmatprep.subr.bf16.mxu0 0
  %312 = vmatpush2.bf16.msra.mxu0 0
  %313 = vmatprep.subr.bf16.mxu0 0
  %314 = vmatpush2.bf16.msra.mxu0 0
  %315 = vmatprep.subr.bf16.mxu0 0
  %316 = vmatpush2.bf16.msra.mxu0 0
  %317 = vmatprep.subr.bf16.mxu0 0
  %318 = vmatpush2.bf16.msra.mxu0 0
  %319 = vmatprep.mubr.bf16.mxu0 0
  %320 = vmatmul.mubr.bf16.gmra.mxu0 %v285
  %v321 = vpop.f32.mrf.mxu0
  %v322 = vadd.f32 0.0, %v321
  %v323 = vpop.f32.mrf.mxu0
  %v324 = vpop.f32.mrf.mxu0
  %v325 = vadd.f32 0.0, %v324
  %v326 = vpop.f32.mrf.mxu0
  %327 = vdwg.mxu0
  %330 = vrot.lane.b32.xlu0 %v322, 32
  %v331 = vpop.permute.xlu0 %330
  %332 = vrot.lane.b32.xlu0 %v325, 32
  %v333 = vpop.permute.xlu0 %332
  %vm336 = vcmask 261120
  %v337 = vsel %vm336, %v117, %v331
  %v338 = vsel %vm336, %v120, %v333
  %v339 = vpack.c.bf16 %v338, %v337
  %v340 = vld [vmem:[%s11] sm:$0xf]
  %v341 = vld [vmem:[%s11 + $0x4] sm:$0xf]
  %v342 = vld [vmem:[%s11 + $0x8] sm:$0xf]
  %v343 = vld [vmem:[%s11 + $0xc] sm:$0xf]
  %v344 = vld [vmem:[%s11 + $0x10] sm:$0xf]
  %v345 = vld [vmem:[%s11 + $0x14] sm:$0xf]
  %v346 = vld [vmem:[%s11 + $0x18] sm:$0xf]
  %v347 = vld [vmem:[%s11 + $0x1c] sm:$0xf]
  %v348 = vld [vmem:[%s12] sm:$0x1]
  %v350 = vlaneseq
  %v351 = vshrl.u32 %v350, 7
  %v352 = vsub.s32 0, %v351
  %v353 = vrot.slane %v348, %v352
  %v363 = vunpack.c.l.b16 %v340
  %v364 = vunpack.c.l.b16 %v341
  %v365 = vunpack.c.l.b16 %v342
  %v366 = vunpack.c.l.b16 %v343
  %v367 = vunpack.c.l.b16 %v344
  %v368 = vunpack.c.l.b16 %v345
  %v369 = vunpack.c.l.b16 %v346
  %v370 = vunpack.c.l.b16 %v347
  %v371 = vpack.c.b16 %v364, %v363
  %v372 = vpack.c.b16 %v366, %v365
  %v373 = vpack.c.b16 %v368, %v367
  %v374 = vpack.c.b16 %v370, %v369
  %vm379 = vcmask 523264
  %v381 = vsel %vm379, %v339, 0
  %383 = vmatprep.subr.bf16.mxu0 0
  %384 = vmatpush1.bf16.msra.mxu0 0
  %385 = vmatprep.subr.bf16.mxu0 0
  %386 = vmatpush1.bf16.msra.mxu0 0
  %387 = vmatprep.subr.bf16.mxu0 0
  %388 = vmatpush1.bf16.msra.mxu0 0
  %389 = vmatprep.subr.bf16.mxu0 0
  %390 = vmatpush1.bf16.msra.mxu0 0
  %391 = vmatprep.subr.bf16.mxu0 0
  %392 = vmatpush1.bf16.msra.mxu0 %v374
  %393 = vmatprep.subr.bf16.mxu0 0
  %394 = vmatpush1.bf16.msra.mxu0 %v373
  %395 = vmatprep.subr.bf16.mxu0 0
  %396 = vmatpush1.bf16.msra.mxu0 %v372
  %397 = vmatprep.subr.bf16.mxu0 0
  %398 = vmatpush1.bf16.msra.mxu0 %v371
  %399 = vmatprep.subr.bf16.mxu0 0
  %400 = vmatpush2.bf16.msra.mxu0 0
  %401 = vmatprep.subr.bf16.mxu0 0
  %402 = vmatpush2.bf16.msra.mxu0 0
  %403 = vmatprep.subr.bf16.mxu0 0
  %404 = vmatpush2.bf16.msra.mxu0 0
  %405 = vmatprep.subr.bf16.mxu0 0
  %406 = vmatpush2.bf16.msra.mxu0 0
  %407 = vmatprep.subr.bf16.mxu0 0
  %408 = vmatpush2.bf16.msra.mxu0 0
  %409 = vmatprep.subr.bf16.mxu0 0
  %410 = vmatpush2.bf16.msra.mxu0 0
  %411 = vmatprep.subr.bf16.mxu0 0
  %412 = vmatpush2.bf16.msra.mxu0 0
  %413 = vmatprep.subr.bf16.mxu0 0
  %414 = vmatpush2.bf16.msra.mxu0 0
  %415 = vmatprep.mubr.bf16.mxu0 0
  %416 = vmatmul.mubr.bf16.gmra.mxu0 %v381
  %v417 = vpop.f32.mrf.mxu0
  %v418 = vadd.f32 %v353, %v417
  %v419 = vpop.f32.mrf.mxu0
  %v420 = vpop.f32.mrf.mxu0
  %v421 = vadd.f32 %v353, %v420
  %v422 = vpop.f32.mrf.mxu0
  %423 = vdwg.mxu0
  %v424 = vmax.f32 %v418, 0.0
  %v425 = vmax.f32 %v421, 0.0
  %v426 = vpack.c.bf16 %v425, %v424
  %427 = vmatprep.subr.bf16.mxu0 0
  %428 = vmatpush1.bf16.msra.mxu0 0
  %429 = vmatprep.subr.bf16.mxu0 0
  %430 = vmatpush1.bf16.msra.mxu0 0
  %431 = vmatprep.subr.bf16.mxu0 0
  %432 = vmatpush1.bf16.msra.mxu0 0
  %433 = vmatprep.subr.bf16.mxu0 0
  %434 = vmatpush1.bf16.msra.mxu0 0
  %435 = vmatprep.subr.bf16.mxu0 0
  %436 = vmatpush1.bf16.msra.mxu0 0
  %437 = vmatprep.subr.bf16.mxu0 0
  %438 = vmatpush1.bf16.msra.mxu0 0
  %439 = vmatprep.subr.bf16.mxu0 0
  %440 = vmatpush1.bf16.msra.mxu0 0
  %441 = vmatprep.subr.bf16.mxu0 0
  %442 = vmatpush1.bf16.msra.mxu0 %v426
  %443 = vmatprep.subr.bf16.mxu0 0
  %444 = vmatpush2.bf16.msra.mxu0 0
  %445 = vmatprep.subr.bf16.mxu0 0
  %446 = vmatpush2.bf16.msra.mxu0 0
  %447 = vmatprep.subr.bf16.mxu0 0
  %448 = vmatpush2.bf16.msra.mxu0 0
  %449 = vmatprep.subr.bf16.mxu0 0
  %450 = vmatpush2.bf16.msra.mxu0 0
  %451 = vmatprep.subr.bf16.mxu0 0
  %452 = vmatpush2.bf16.msra.mxu0 0
  %453 = vmatprep.subr.bf16.mxu0 0
  %454 = vmatpush2.bf16.msra.mxu0 0
  %455 = vmatprep.subr.bf16.mxu0 0
  %456 = vmatpush2.bf16.msra.mxu0 0
  %457 = vmatprep.subr.bf16.mxu0 0
  %458 = vmatpush2.bf16.msra.mxu0 0
  %459 = vmatprep.mubr.bf16.mxu0 0
  %460 = vmatmul.mubr.bf16.gmra.mxu0 %v285
  %v461 = vpop.f32.mrf.mxu0
  %v462 = vadd.f32 0.0, %v461
  %v463 = vpop.f32.mrf.mxu0
  %v464 = vpop.f32.mrf.mxu0
  %v465 = vadd.f32 0.0, %v464
  %v466 = vpop.f32.mrf.mxu0
  %467 = vdwg.mxu0
  %470 = vrot.lane.b32.xlu0 %v462, 32
  %v471 = vpop.permute.xlu0 %470
  %472 = vrot.lane.b32.xlu0 %v465, 32
  %v473 = vpop.permute.xlu0 %472
  %v476 = vsel %vm336, %v424, %v471
  %v477 = vsel %vm336, %v425, %v473
  %v478 = vpack.c.bf16 %v477, %v476
  %s479 = scalar_lea.vmem %s11, 32
  %v480 = vld [vmem:[%s479] sm:$0xf]
  %v481 = vld [vmem:[%s479 + $0x4] sm:$0xf]
  %v482 = vld [vmem:[%s479 + $0x8] sm:$0xf]
  %v483 = vld [vmem:[%s479 + $0xc] sm:$0xf]
  %v484 = vld [vmem:[%s479 + $0x10] sm:$0xf]
  %v485 = vld [vmem:[%s479 + $0x14] sm:$0xf]
  %v486 = vld [vmem:[%s479 + $0x18] sm:$0xf]
  %v487 = vld [vmem:[%s479 + $0x1c] sm:$0xf]
  %s488 = scalar_lea.vmem %s12, 1
  %v489 = vld [vmem:[%s488] sm:$0x1]
  %v491 = vlaneseq
  %v492 = vshrl.u32 %v491, 7
  %v493 = vsub.s32 0, %v492
  %v494 = vrot.slane %v489, %v493
  %v504 = vunpack.c.l.b16 %v480
  %v505 = vunpack.c.l.b16 %v481
  %v506 = vunpack.c.l.b16 %v482
  %v507 = vunpack.c.l.b16 %v483
  %v508 = vunpack.c.l.b16 %v484
  %v509 = vunpack.c.l.b16 %v485
  %v510 = vunpack.c.l.b16 %v486
  %v511 = vunpack.c.l.b16 %v487
  %v512 = vpack.c.b16 %v505, %v504
  %v513 = vpack.c.b16 %v507, %v506
  %v514 = vpack.c.b16 %v509, %v508
  %v515 = vpack.c.b16 %v511, %v510
  %v521 = vsel %vm379, %v478, 0
  %523 = vmatprep.subr.bf16.mxu0 0
  %524 = vmatpush1.bf16.msra.mxu0 0
  %525 = vmatprep.subr.bf16.mxu0 0
  %526 = vmatpush1.bf16.msra.mxu0 0
  %527 = vmatprep.subr.bf16.mxu0 0
  %528 = vmatpush1.bf16.msra.mxu0 0
  %529 = vmatprep.subr.bf16.mxu0 0
  %530 = vmatpush1.bf16.msra.mxu0 0
  %531 = vmatprep.subr.bf16.mxu0 0
  %532 = vmatpush1.bf16.msra.mxu0 %v515
  %533 = vmatprep.subr.bf16.mxu0 0
  %534 = vmatpush1.bf16.msra.mxu0 %v514
  %535 = vmatprep.subr.bf16.mxu0 0
  %536 = vmatpush1.bf16.msra.mxu0 %v513
  %537 = vmatprep.subr.bf16.mxu0 0
  %538 = vmatpush1.bf16.msra.mxu0 %v512
  %539 = vmatprep.subr.bf16.mxu0 0
  %540 = vmatpush2.bf16.msra.mxu0 0
  %541 = vmatprep.subr.bf16.mxu0 0
  %542 = vmatpush2.bf16.msra.mxu0 0
  %543 = vmatprep.subr.bf16.mxu0 0
  %544 = vmatpush2.bf16.msra.mxu0 0
  %545 = vmatprep.subr.bf16.mxu0 0
  %546 = vmatpush2.bf16.msra.mxu0 0
  %547 = vmatprep.subr.bf16.mxu0 0
  %548 = vmatpush2.bf16.msra.mxu0 0
  %549 = vmatprep.subr.bf16.mxu0 0
  %550 = vmatpush2.bf16.msra.mxu0 0
  %551 = vmatprep.subr.bf16.mxu0 0
  %552 = vmatpush2.bf16.msra.mxu0 0
  %553 = vmatprep.subr.bf16.mxu0 0
  %554 = vmatpush2.bf16.msra.mxu0 0
  %555 = vmatprep.mubr.bf16.mxu0 0
  %556 = vmatmul.mubr.bf16.gmra.mxu0 %v521
  %v557 = vpop.f32.mrf.mxu0
  %v558 = vadd.f32 %v494, %v557
  %v559 = vpop.f32.mrf.mxu0
  %v560 = vpop.f32.mrf.mxu0
  %v561 = vadd.f32 %v494, %v560
  %v562 = vpop.f32.mrf.mxu0
  %563 = vdwg.mxu0
  %v564 = vmax.f32 %v558, 0.0
  %v565 = vmax.f32 %v561, 0.0
  %v566 = vpack.c.bf16 %v565, %v564
  %v567 = vld [vmem:[%s3] sm:$0xf]
  %v568 = vld [vmem:[%s3 + $0x4] sm:$0xf]
  %v569 = vld [vmem:[%s3 + $0x8] sm:$0xf]
  %v573 = vunpack.c.l.b16 %v567
  %v574 = vunpack.c.l.b16 %v568
  %v575 = vunpack.c.l.b16 %v569
  %v576 = vpack.c.b16 %v574, %v573
  %v577 = vpack.c.b16 %v575, %v575
  %v579 = vsel %vm221, %v576, 0
  %v582 = vsel %vm221, %v577, 0
  %584 = vmatprep.subr.bf16.mxu0 0
  %585 = vmatpush1.bf16.msra.mxu0 0
  %586 = vmatprep.subr.bf16.mxu0 0
  %587 = vmatpush1.bf16.msra.mxu0 0
  %588 = vmatprep.subr.bf16.mxu0 0
  %589 = vmatpush1.bf16.msra.mxu0 0
  %590 = vmatprep.subr.bf16.mxu0 0
  %591 = vmatpush1.bf16.msra.mxu0 0
  %592 = vmatprep.subr.bf16.mxu0 0
  %593 = vmatpush1.bf16.msra.mxu0 0
  %594 = vmatprep.subr.bf16.mxu0 0
  %595 = vmatpush1.bf16.msra.mxu0 0
  %596 = vmatprep.subr.bf16.mxu0 0
  %597 = vmatpush1.bf16.msra.mxu0 0
  %598 = vmatprep.subr.bf16.mxu0 0
  %599 = vmatpush1.bf16.msra.mxu0 %v566
  %600 = vmatprep.subr.bf16.mxu0 0
  %601 = vmatpush2.bf16.msra.mxu0 0
  %602 = vmatprep.subr.bf16.mxu0 0
  %603 = vmatpush2.bf16.msra.mxu0 0
  %604 = vmatprep.subr.bf16.mxu0 0
  %605 = vmatpush2.bf16.msra.mxu0 0
  %606 = vmatprep.subr.bf16.mxu0 0
  %607 = vmatpush2.bf16.msra.mxu0 0
  %608 = vmatprep.subr.bf16.mxu0 0
  %609 = vmatpush2.bf16.msra.mxu0 0
  %610 = vmatprep.subr.bf16.mxu0 0
  %611 = vmatpush2.bf16.msra.mxu0 0
  %612 = vmatprep.subr.bf16.mxu0 0
  %613 = vmatpush2.bf16.msra.mxu0 0
  %614 = vmatprep.subr.bf16.mxu0 0
  %615 = vmatpush2.bf16.msra.mxu0 0
  %616 = vmatprep.mubr.bf16.mxu0 0
  %617 = vmatmul.mubr.bf16.gmra.mxu0 %v579
  %v618 = vpop.f32.mrf.mxu0
  %v619 = vadd.f32 0.0, %v618
  %v620 = vpop.f32.mrf.mxu0
  %v621 = vpop.f32.mrf.mxu0
  %v622 = vadd.f32 0.0, %v621
  %v623 = vpop.f32.mrf.mxu0
  %624 = vmatprep.mubr.bf16.mxu0 0
  %625 = vmatmul.mubr.bf16.gmra.mxu0 %v582
  %v626 = vpop.f32.mrf.mxu0
  %v627 = vadd.f32 0.0, %v626
  %v628 = vpop.f32.mrf.mxu0
  %v629 = vpop.f32.mrf.mxu0
  %v630 = vpop.f32.mrf.mxu0
  %631 = vdwg.mxu0
  %v632 = vld [vmem:[%s4] sm:$0xf]
  %v633 = vld [vmem:[%s4 + $0x4] sm:$0xf]
  %v634 = vld [vmem:[%s4 + $0x8] sm:$0xf]
  %v638 = vunpack.c.l.b16 %v632
  %v639 = vunpack.c.l.b16 %v633
  %v640 = vunpack.c.l.b16 %v634
  %v641 = vpack.c.b16 %v639, %v638
  %v642 = vpack.c.b16 %v640, %v640
  %v644 = vsel %vm221, %v641, 0
  %v647 = vsel %vm221, %v642, 0
  %649 = vmatprep.subr.bf16.mxu0 0
  %650 = vmatpush1.bf16.msra.mxu0 0
  %651 = vmatprep.subr.bf16.mxu0 0
  %652 = vmatpush1.bf16.msra.mxu0 0
  %653 = vmatprep.subr.bf16.mxu0 0
  %654 = vmatpush1.bf16.msra.mxu0 0
  %655 = vmatprep.subr.bf16.mxu0 0
  %656 = vmatpush1.bf16.msra.mxu0 0
  %657 = vmatprep.subr.bf16.mxu0 0
  %658 = vmatpush1.bf16.msra.mxu0 0
  %659 = vmatprep.subr.bf16.mxu0 0
  %660 = vmatpush1.bf16.msra.mxu0 0
  %661 = vmatprep.subr.bf16.mxu0 0
  %662 = vmatpush1.bf16.msra.mxu0 0
  %663 = vmatprep.subr.bf16.mxu0 0
  %664 = vmatpush1.bf16.msra.mxu0 %v566
  %665 = vmatprep.subr.bf16.mxu0 0
  %666 = vmatpush2.bf16.msra.mxu0 0
  %667 = vmatprep.subr.bf16.mxu0 0
  %668 = vmatpush2.bf16.msra.mxu0 0
  %669 = vmatprep.subr.bf16.mxu0 0
  %670 = vmatpush2.bf16.msra.mxu0 0
  %671 = vmatprep.subr.bf16.mxu0 0
  %672 = vmatpush2.bf16.msra.mxu0 0
  %673 = vmatprep.subr.bf16.mxu0 0
  %674 = vmatpush2.bf16.msra.mxu0 0
  %675 = vmatprep.subr.bf16.mxu0 0
  %676 = vmatpush2.bf16.msra.mxu0 0
  %677 = vmatprep.subr.bf16.mxu0 0
  %678 = vmatpush2.bf16.msra.mxu0 0
  %679 = vmatprep.subr.bf16.mxu0 0
  %680 = vmatpush2.bf16.msra.mxu0 0
  %681 = vmatprep.mubr.bf16.mxu0 0
  %682 = vmatmul.mubr.bf16.gmra.mxu0 %v644
  %v683 = vpop.f32.mrf.mxu0
  %v684 = vadd.f32 0.0, %v683
  %v685 = vpop.f32.mrf.mxu0
  %v686 = vpop.f32.mrf.mxu0
  %v687 = vadd.f32 0.0, %v686
  %v688 = vpop.f32.mrf.mxu0
  %689 = vmatprep.mubr.bf16.mxu0 0
  %690 = vmatmul.mubr.bf16.gmra.mxu0 %v647
  %v691 = vpop.f32.mrf.mxu0
  %v692 = vadd.f32 0.0, %v691
  %v693 = vpop.f32.mrf.mxu0
  %v694 = vpop.f32.mrf.mxu0
  %v695 = vpop.f32.mrf.mxu0
  %696 = vdwg.mxu0
  %700 = vrot.lane.b32.xlu0 %v684, 32
  %v701 = vpop.permute.xlu0 %700
  %702 = vrot.lane.b32.xlu0 %v687, 32
  %v703 = vpop.permute.xlu0 %702
  %704 = vrot.lane.b32.xlu0 %v692, 32
  %v705 = vpop.permute.xlu0 %704
  %712 = vrot.lane.b32.xlu0 %v263, 64
  %v713 = vpop.permute.xlu0 %712
  %714 = vrot.lane.b32.xlu0 %v266, 64
  %v715 = vpop.permute.xlu0 %714
  %716 = vrot.lane.b32.xlu0 %v271, 64
  %v717 = vpop.permute.xlu0 %716
  %v721 = vsel %vm336, %v619, %v701
  %v722 = vsel %vm336, %v622, %v703
  %v723 = vsel %vm336, %v627, %v705
  %v724 = vsel %vm379, %v721, %v713
  %v725 = vsel %vm379, %v722, %v715
  %v726 = vsel %vm379, %v723, %v717
  %v727 = vpack.c.bf16 %v725, %v724
  %v728 = vpack.c.bf16 %v726, %v726
  %v729 = vld [vmem:[%s13] sm:$0xf]
  %v730 = vld [vmem:[%s13 + $0x4] sm:$0xf]
  %v731 = vld [vmem:[%s13 + $0x8] sm:$0xf]
  %v732 = vld [vmem:[%s13 + $0xc] sm:$0xf]
  %v733 = vld [vmem:[%s13 + $0x10] sm:$0xf]
  %v734 = vld [vmem:[%s13 + $0x14] sm:$0xf]
  %v735 = vld [vmem:[%s13 + $0x18] sm:$0xf]
  %v736 = vld [vmem:[%s13 + $0x1c] sm:$0xf]
  %v737 = vld [vmem:[%s13 + $0x20] sm:$0xf]
  %v738 = vld [vmem:[%s13 + $0x24] sm:$0xf]
  %v739 = vld [vmem:[%s13 + $0x28] sm:$0xf]
  %v740 = vld [vmem:[%s13 + $0x2c] sm:$0xf]
  %v741 = vld [vmem:[%s14] sm:$0x1]
  %v743 = vlaneseq
  %v744 = vshrl.u32 %v743, 7
  %v745 = vsub.s32 0, %v744
  %v746 = vrot.slane %v741, %v745
  %v760 = vunpack.c.l.b16 %v729
  %v761 = vunpack.c.l.b16 %v730
  %v762 = vunpack.c.l.b16 %v731
  %v763 = vunpack.c.l.b16 %v732
  %v764 = vunpack.c.l.b16 %v733
  %v765 = vunpack.c.l.b16 %v734
  %v766 = vunpack.c.l.b16 %v735
  %v767 = vunpack.c.l.b16 %v736
  %v768 = vunpack.c.l.b16 %v737
  %v769 = vunpack.c.l.b16 %v738
  %v770 = vunpack.c.l.b16 %v739
  %v771 = vunpack.c.l.b16 %v740
  %v772 = vpack.c.b16 %v761, %v760
  %v773 = vpack.c.b16 %v763, %v762
  %v774 = vpack.c.b16 %v765, %v764
  %v775 = vpack.c.b16 %v767, %v766
  %v776 = vpack.c.b16 %v769, %v768
  %v777 = vpack.c.b16 %v771, %v770
  %vm784 = vcmask 785408
  %v786 = vsel %vm784, %v727, 0
  %v789 = vsel %vm784, %v728, 0
  %791 = vmatprep.subr.bf16.mxu0 0
  %792 = vmatpush1.bf16.msra.mxu0 0
  %793 = vmatprep.subr.bf16.mxu0 0
  %794 = vmatpush1.bf16.msra.mxu0 0
  %795 = vmatprep.subr.bf16.mxu0 0
  %796 = vmatpush1.bf16.msra.mxu0 %v777
  %797 = vmatprep.subr.bf16.mxu0 0
  %798 = vmatpush1.bf16.msra.mxu0 %v776
  %799 = vmatprep.subr.bf16.mxu0 0
  %800 = vmatpush1.bf16.msra.mxu0 %v775
  %801 = vmatprep.subr.bf16.mxu0 0
  %802 = vmatpush1.bf16.msra.mxu0 %v774
  %803 = vmatprep.subr.bf16.mxu0 0
  %804 = vmatpush1.bf16.msra.mxu0 %v773
  %805 = vmatprep.subr.bf16.mxu0 0
  %806 = vmatpush1.bf16.msra.mxu0 %v772
  %807 = vmatprep.subr.bf16.mxu0 0
  %808 = vmatpush2.bf16.msra.mxu0 0
  %809 = vmatprep.subr.bf16.mxu0 0
  %810 = vmatpush2.bf16.msra.mxu0 0
  %811 = vmatprep.subr.bf16.mxu0 0
  %812 = vmatpush2.bf16.msra.mxu0 0
  %813 = vmatprep.subr.bf16.mxu0 0
  %814 = vmatpush2.bf16.msra.mxu0 0
  %815 = vmatprep.subr.bf16.mxu0 0
  %816 = vmatpush2.bf16.msra.mxu0 0
  %817 = vmatprep.subr.bf16.mxu0 0
  %818 = vmatpush2.bf16.msra.mxu0 0
  %819 = vmatprep.subr.bf16.mxu0 0
  %820 = vmatpush2.bf16.msra.mxu0 0
  %821 = vmatprep.subr.bf16.mxu0 0
  %822 = vmatpush2.bf16.msra.mxu0 0
  %823 = vmatprep.mubr.bf16.mxu0 0
  %824 = vmatmul.mubr.bf16.gmra.mxu0 %v786
  %v825 = vpop.f32.mrf.mxu0
  %v826 = vadd.f32 %v746, %v825
  %v827 = vpop.f32.mrf.mxu0
  %v828 = vpop.f32.mrf.mxu0
  %v829 = vadd.f32 %v746, %v828
  %v830 = vpop.f32.mrf.mxu0
  %831 = vmatprep.mubr.bf16.mxu0 0
  %832 = vmatmul.mubr.bf16.gmra.mxu0 %v789
  %v833 = vpop.f32.mrf.mxu0
  %v834 = vadd.f32 %v746, %v833
  %v835 = vpop.f32.mrf.mxu0
  %v836 = vpop.f32.mrf.mxu0
  %v837 = vpop.f32.mrf.mxu0
  %838 = vdwg.mxu0
  %v839 = vmax.f32 %v826, 0.0
  %v840 = vmax.f32 %v829, 0.0
  %v841 = vmax.f32 %v834, 0.0
  %v842 = vpack.c.bf16 %v840, %v839
  %v843 = vpack.c.bf16 %v841, %v841
  %v844 = vld [vmem:[%s15] sm:$0xf]
  %v845 = vld [vmem:[%s15 + $0x4] sm:$0xf]
  %v846 = vld [vmem:[#allocation2] sm:$0x1]
  %v848 = vlaneseq
  %v849 = vshrl.u32 %v848, 7
  %v850 = vsub.s32 0, %v849
  %v851 = vrot.slane %v846, %v850
  %v855 = vunpack.c.l.b16 %v844
  %v856 = vunpack.c.l.b16 %v845
  %v857 = vpack.c.b16 %v856, %v855
  %v860 = vsel %vm221, %v842, 0
  %v863 = vsel %vm221, %v843, 0
  %865 = vmatprep.subr.bf16.mxu0 0
  %866 = vmatpush1.bf16.msra.mxu0 0
  %867 = vmatprep.subr.bf16.mxu0 0
  %868 = vmatpush1.bf16.msra.mxu0 0
  %869 = vmatprep.subr.bf16.mxu0 0
  %870 = vmatpush1.bf16.msra.mxu0 0
  %871 = vmatprep.subr.bf16.mxu0 0
  %872 = vmatpush1.bf16.msra.mxu0 0
  %873 = vmatprep.subr.bf16.mxu0 0
  %874 = vmatpush1.bf16.msra.mxu0 0
  %875 = vmatprep.subr.bf16.mxu0 0
  %876 = vmatpush1.bf16.msra.mxu0 0
  %877 = vmatprep.subr.bf16.mxu0 0
  %878 = vmatpush1.bf16.msra.mxu0 0
  %879 = vmatprep.subr.bf16.mxu0 0
  %880 = vmatpush1.bf16.msra.mxu0 %v857
  %881 = vmatprep.subr.bf16.mxu0 0
  %882 = vmatpush2.bf16.msra.mxu0 0
  %883 = vmatprep.subr.bf16.mxu0 0
  %884 = vmatpush2.bf16.msra.mxu0 0
  %885 = vmatprep.subr.bf16.mxu0 0
  %886 = vmatpush2.bf16.msra.mxu0 0
  %887 = vmatprep.subr.bf16.mxu0 0
  %888 = vmatpush2.bf16.msra.mxu0 0
  %889 = vmatprep.subr.bf16.mxu0 0
  %890 = vmatpush2.bf16.msra.mxu0 0
  %891 = vmatprep.subr.bf16.mxu0 0
  %892 = vmatpush2.bf16.msra.mxu0 0
  %893 = vmatprep.subr.bf16.mxu0 0
  %894 = vmatpush2.bf16.msra.mxu0 0
  %895 = vmatprep.subr.bf16.mxu0 0
  %896 = vmatpush2.bf16.msra.mxu0 0
  %897 = vmatprep.mubr.bf16.mxu0 0
  %898 = vmatmul.mubr.bf16.gmra.mxu0 %v860
  %v899 = vpop.f32.mrf.mxu0
  %v900 = vadd.f32 %v851, %v899
  %v901 = vpop.f32.mrf.mxu0
  %v902 = vpop.f32.mrf.mxu0
  %v903 = vadd.f32 %v851, %v902
  %v904 = vpop.f32.mrf.mxu0
  %905 = vmatprep.mubr.bf16.mxu0 0
  %906 = vmatmul.mubr.bf16.gmra.mxu0 %v863
  %v907 = vpop.f32.mrf.mxu0
  %v908 = vadd.f32 %v851, %v907
  %v909 = vpop.f32.mrf.mxu0
  %v910 = vpop.f32.mrf.mxu0
  %v911 = vpop.f32.mrf.mxu0
  %912 = vdwg.mxu0
  %vm913 = vcmask 7168
  %914 = vst.msk [vmem:[%s17] sm:$0xff] %vm913, %v900
  %915 = vst.msk [vmem:[%s17 + $0x8] sm:$0xff] %vm913, %v903
  %916 = vst.msk [vmem:[%s17 + $0x10] sm:$0xff] %vm913, %v908
  // Predicated region
  $region70: #{tpu_custom_call.1} parent=0 // pred_check
    _
  $region71: #{tpu_custom_call.1} parent=0 // pred_check_branch
    %918 = sbr.rel (0) target = $region73
  $region72: #{tpu_custom_call.1} parent=0 // pred_region
    _
  $region73: #{tpu_custom_call.1} parent=0 // pred_fallthru
    _
  // Predicated region
  $region74: #{tpu_custom_call.1} parent=0 // pred_check
    _
  $region75: #{tpu_custom_call.1} parent=0 // pred_check_branch
    %920 = sbr.rel (0) target = $region77
  $region76: #{tpu_custom_call.1} parent=0 // pred_region
    _
  $region77: #{tpu_custom_call.1} parent=0 // pred_fallthru
    _

</llo_original>
